<compile_context>
chip_gen: v6e
topology: v6e:2x2x1
jax: 0.10.0
libtpu: 0.0.40
codegen_flags: <defaults>
</compile_context>

<pallas_src>
import functools
import math

import jax
import jax.numpy as jnp
from jax.experimental import pallas as pl
from jax.experimental.pallas import tpu as pltpu


def _pick_tile(n, cap, min_programs=1):
    """Largest multiple-of-8 divisor of n that is <= cap (optionally ensuring
    at least `min_programs` grid steps); falls back to the full dimension."""
    cap = min(cap, n)
    if min_programs > 1 and n >= 8 * min_programs:
        cap = min(cap, n // min_programs)
    best = 0
    t = 8
    while t <= cap:
        if n % t == 0:
            best = t
        t += 8
    return best if best > 0 else n


# --------------------------- Kernel A: LN + fused QKV ------------------------
def _ln_qkv_kernel(x_ref, g_ref, b_ref, w_ref, q_ref, k_ref, v_ref, *,
                   eps, d_model, mxu_dtype):
    x = x_ref[...]                                          # (tm, D) f32
    mean = jnp.mean(x, axis=-1, keepdims=True)
    var = jnp.mean((x - mean) ** 2, axis=-1, keepdims=True)
    xn = (x - mean) * jax.lax.rsqrt(var + eps)
    xn = xn * g_ref[...] + b_ref[...]                       # (tm, D)
    # Single wide lane-dense GEMM: (tm, D) @ (D, 3D); bf16 operands, f32 acc.
    # Weights arrive pre-cast to mxu_dtype (no per-step in-kernel cast).
    qkv = jnp.dot(xn.astype(mxu_dtype), w_ref[...],
                  preferred_element_type=jnp.float32)       # (tm, 3D) f32
    q_ref[...] = qkv[:, :d_model].astype(q_ref.dtype)
    k_ref[...] = qkv[:, d_model:2 * d_model].astype(k_ref.dtype)
    v_ref[...] = qkv[:, 2 * d_model:].astype(v_ref.dtype)


# ------------------- Kernel B: flash attention (online softmax) --------------
def _flash_attn_kernel(q_ref, k_ref, v_ref, o_ref, m_sc, l_sc, acc_sc, *,
                       heads, head_dim, mxu_dtype):
    ki = pl.program_id(2)

    @pl.when(ki == 0)
    def _():
        m_sc[...] = jnp.full(m_sc.shape, -jnp.inf, dtype=m_sc.dtype)
        l_sc[...] = jnp.zeros(l_sc.shape, dtype=l_sc.dtype)
        acc_sc[...] = jnp.zeros(acc_sc.shape, dtype=acc_sc.dtype)

    # Full-width lane-dense loads; 1/sqrt(head_dim) is folded into Q weights.
    q = q_ref[...]                                          # (tq, D)  bf16
    k = k_ref[...]                                          # (tkv, D) bf16
    v = v_ref[...]                                          # (tkv, D) bf16

    # Per-head block-diagonal attention (static head loop; all state in VMEM).
    for h in range(heads):
        lo = h * head_dim
        hi = lo + head_dim
        q_h = q[:, lo:hi]                                   # (tq, hd)
        k_h = k[:, lo:hi]                                   # (tkv, hd)
        v_h = v[:, lo:hi]                                   # (tkv, hd)
        # NT contraction over head_dim: no explicit K transpose traced.
        s = jax.lax.dot_general(q_h, k_h, (((1,), (1,)), ((), ())),
                                preferred_element_type=jnp.float32)  # (tq,tkv)
        m_prev = m_sc[h]                                    # (tq, 1)
        m_new = jnp.maximum(m_prev, jnp.max(s, axis=-1, keepdims=True))
        alpha = jnp.exp(m_prev - m_new)
        p = jnp.exp(s - m_new)
        l_sc[h] = alpha * l_sc[h] + jnp.sum(p, axis=-1, keepdims=True)
        acc_sc[h] = alpha * acc_sc[h] + jnp.dot(
            p.astype(mxu_dtype), v_h, preferred_element_type=jnp.float32)
        m_sc[h] = m_new

    @pl.when(ki == pl.num_programs(2) - 1)
    def _():
        # Exact normalization (once per q-tile) and a single lane-dense
        # full-width (tq, D) store.
        outs = [acc_sc[h] / l_sc[h] for h in range(heads)]
        o_ref[...] = jnp.concatenate(outs, axis=-1).astype(o_ref.dtype)


# ------------------ Kernel C: output projection + residual -------------------
def _out_proj_kernel(a_ref, x_ref, w_ref, o_ref):
    proj = jnp.dot(a_ref[...], w_ref[...],
                   preferred_element_type=jnp.float32)       # (tm, D) f32
    o_ref[...] = (proj + x_ref[...]).astype(o_ref.dtype)
    # TODO(synk): training-mode dropout (RNG mask via pltpu.prng_*) not implemented.


def attention_pallas(x, w_qkv, w_out, gamma, beta, heads, *,
                     eps=1e-5, mxu_dtype=jnp.bfloat16,
                     vmem_limit_bytes=48 * 1024 * 1024):
    """x: (B, N, D) f32. w_qkv: (3D, D), w_out: (D, D) (torch Linear layout).

    mxu_dtype=jnp.bfloat16 (default) uses bf16 MXU operands with f32
    accumulation; pass jnp.float32 for bitwise-closer parity to torch.
    """
    B, N, D = x.shape
    hd = D // heads
    BN = B * N
    scale = 1.0 / math.sqrt(hd)

    # ---- one-time weight prep (outside the kernels): lane-dense fused QKV
    #      weight, columns = [Q | K | V], head-major within each third, scale
    #      folded into Q; cast to MXU dtype ONCE. ----
    w3 = w_qkv.reshape(heads, 3, hd, D)                     # torch row layout
    wq_t = jnp.transpose(w3[:, 0].reshape(D, D)) * scale    # (D, D)
    wk_t = jnp.transpose(w3[:, 1].reshape(D, D))            # (D, D)
    wv_t = jnp.transpose(w3[:, 2].reshape(D, D))            # (D, D)
    w_qkv_f = jnp.concatenate([wq_t, wk_t, wv_t], axis=1).astype(mxu_dtype)
    w_out_t = jnp.transpose(w_out).astype(mxu_dtype)        # (D, D)
    gamma2 = gamma.reshape(1, D).astype(jnp.float32)
    beta2 = beta.reshape(1, D).astype(jnp.float32)

    x2 = x.reshape(BN, D)
    act_dtype = jnp.bfloat16 if mxu_dtype == jnp.bfloat16 else jnp.float32

    # ---------------- Kernel A: LayerNorm + fused QKV GEMM ----------------
    # TODO(synk): for very large D (weight > ~VMEM budget) add a column grid
    # axis so only a (D, tn) weight slab is resident (v7x 64 MiB VMEM).
    tm = _pick_tile(BN, 512, min_programs=2)   # >=2 programs -> both v7x TCs
    n_row = BN // tm
    q, k, v = pl.pallas_call(
        functools.partial(_ln_qkv_kernel, eps=eps, d_model=D,
                          mxu_dtype=mxu_dtype),
        out_shape=(jax.ShapeDtypeStruct((BN, D), act_dtype),
                   jax.ShapeDtypeStruct((BN, D), act_dtype),
                   jax.ShapeDtypeStruct((BN, D), act_dtype)),
        grid_spec=pltpu.PrefetchScalarGridSpec(
            num_scalar_prefetch=0,
            grid=(n_row,),
            in_specs=[
                pl.BlockSpec((tm, D), lambda i: (i, 0)),           # x rows
                pl.BlockSpec((1, D), lambda i: (0, 0)),            # gamma
                pl.BlockSpec((1, D), lambda i: (0, 0)),            # beta
                pl.BlockSpec((D, 3 * D), lambda i: (0, 0)),        # fused Wqkv
            ],
            out_specs=[pl.BlockSpec((tm, D), lambda i: (i, 0)),
                       pl.BlockSpec((tm, D), lambda i: (i, 0)),
                       pl.BlockSpec((tm, D), lambda i: (i, 0))],
        ),
        compiler_params=pltpu.CompilerParams(
            dimension_semantics=("parallel",),
            vmem_limit_bytes=vmem_limit_bytes),
        cost_estimate=pl.CostEstimate(
            flops=2 * BN * D * 3 * D + 8 * BN * D,
            transcendentals=BN,
            bytes_accessed=4 * BN * D + 2 * D * 3 * D + 2 * BN * 3 * D + 8 * D),
    )(x2, gamma2, beta2, w_qkv_f)

    # ---------------- Kernel B: flash attention (all heads / program) -------
    tq = _pick_tile(N, 256)
    tkv = _pick_tile(N, 512)
    n_q, n_kv = N // tq, N // tkv
    attn = pl.pallas_call(
        functools.partial(_flash_attn_kernel, heads=heads, head_dim=hd,
                          mxu_dtype=mxu_dtype),
        out_shape=jax.ShapeDtypeStruct((BN, D), act_dtype),
        grid_spec=pltpu.PrefetchScalarGridSpec(
            num_scalar_prefetch=0,
            grid=(B, n_q, n_kv),
            in_specs=[
                pl.BlockSpec((tq, D), lambda b, qi, ki: (b * n_q + qi, 0)),
                pl.BlockSpec((tkv, D), lambda b, qi, ki: (b * n_kv + ki, 0)),
                pl.BlockSpec((tkv, D), lambda b, qi, ki: (b * n_kv + ki, 0)),
            ],
            out_specs=pl.BlockSpec((tq, D),
                                   lambda b, qi, ki: (b * n_q + qi, 0)),
            scratch_shapes=[
                pltpu.VMEM((heads, tq, 1), jnp.float32),    # running max m
                pltpu.VMEM((heads, tq, 1), jnp.float32),    # running denom l
                pltpu.VMEM((heads, tq, hd), jnp.float32),   # output accumulator
            ],
        ),
        compiler_params=pltpu.CompilerParams(
            dimension_semantics=("parallel", "parallel", "arbitrary"),
            vmem_limit_bytes=vmem_limit_bytes),
        cost_estimate=pl.CostEstimate(
            flops=4 * B * heads * N * N * hd,
            transcendentals=B * heads * N * N,
            bytes_accessed=2 * 4 * BN * D),
    )(q, k, v)

    # ---------------- Kernel C: output projection + residual ----------------
    out = pl.pallas_call(
        _out_proj_kernel,
        out_shape=jax.ShapeDtypeStruct((BN, D), x.dtype),
        grid_spec=pltpu.PrefetchScalarGridSpec(
            num_scalar_prefetch=0,
            grid=(n_row,),
            in_specs=[
                pl.BlockSpec((tm, D), lambda i: (i, 0)),   # concat-heads rows
                pl.BlockSpec((tm, D), lambda i: (i, 0)),   # residual x rows
                pl.BlockSpec((D, D), lambda i: (0, 0)),    # Wout^T (bf16)
            ],
            out_specs=pl.BlockSpec((tm, D), lambda i: (i, 0)),
        ),
        compiler_params=pltpu.CompilerParams(
            dimension_semantics=("parallel",),
            vmem_limit_bytes=vmem_limit_bytes),
        cost_estimate=pl.CostEstimate(
            flops=2 * BN * D * D + BN * D,
            transcendentals=0,
            bytes_accessed=2 * BN * D + 4 * BN * D + 2 * D * D + 4 * BN * D),
    )(attn, x2, w_out_t)

    return out.reshape(B, N, D)


def attention_reference(x, w_qkv, w_out, gamma, beta, heads, eps=1e-5):
    """Pure-JAX transcription of the PyTorch forward (eval mode)."""
    B, N, D = x.shape
    head_dim = D // heads
    mean = x.mean(-1, keepdims=True)
    var = ((x - mean) ** 2).mean(-1, keepdims=True)
    xn = (x - mean) / jnp.sqrt(var + eps) * gamma + beta
    qkv = xn @ w_qkv.T                                          # (B, N, 3D)
    qkv = qkv.reshape(B, N, heads, 3, head_dim)
    qkv = jnp.transpose(qkv, (2, 0, 3, 1, 4))                   # (H, B, 3, N, hd)
    q, k, v = qkv[:, :, 0], qkv[:, :, 1], qkv[:, :, 2]          # (H, B, N, hd)
    scores = jnp.einsum('hbid,hbjd->bhij', q, k) / head_dim ** 0.5
    attn = jax.nn.softmax(scores, axis=-1)
    out = jnp.einsum('bhij,hbjd->bhid', attn, v)                # (B, H, N, hd)
    out = jnp.transpose(out, (0, 2, 1, 3)).reshape(B, N, D)
    return out @ w_out.T + x


if __name__ == "__main__":
    B, N, dim, heads = 2, 8, 32, 4

    key = jax.random.PRNGKey(0)
    kx, kqkv, kout = jax.random.split(key, 3)

    x = jax.random.normal(kx, (B, N, dim), dtype=jnp.float32)
    # deterministic "linear layer" weights (torch conv: W is (out, in))
    w_qkv = jax.random.normal(kqkv, (3 * dim, dim), dtype=jnp.float32) * 0.05
    w_out = jax.random.normal(kout, (dim, dim), dtype=jnp.float32) * 0.05
    gamma = jnp.ones((dim,), dtype=jnp.float32)    # LayerNorm default init
    beta = jnp.zeros((dim,), dtype=jnp.float32)

    out = attention_pallas(x, w_qkv, w_out, gamma, beta, heads)
    out = jax.block_until_ready(out)

    ref = attention_reference(x, w_qkv, w_out, gamma, beta, heads)
    assert out.shape == (B, N, dim)
    # tolerance accounts for bf16 MXU operands / bf16 q,k,v,attn intermediates
    assert jnp.max(jnp.abs(out - ref)) < 2e-2, "mismatch vs reference"

    print("KERNEL_OK")
</pallas_src>

<mosaic_0001>
module attributes {stable_mosaic.version = 11 : i64} {
  func.func @_ln_qkv_kernel(%arg0: i32, %arg1: memref<8x32xf32, #tpu.memory_space<vmem>>, %arg2: memref<1x32xf32, #tpu.memory_space<vmem>>, %arg3: memref<1x32xf32, #tpu.memory_space<vmem>>, %arg4: memref<32x96xbf16, #tpu.memory_space<vmem>>, %arg5: memref<8x32xbf16, #tpu.memory_space<vmem>>, %arg6: memref<8x32xbf16, #tpu.memory_space<vmem>>, %arg7: memref<8x32xbf16, #tpu.memory_space<vmem>>) attributes {dimension_semantics = [#tpu.dimension_semantics<parallel>], iteration_bounds = array<i64: 2>, scalar_prefetch = 0 : i64, scratch_operands = 0 : i64, tpu.core_type = #tpu.core_type<tc>, window_params = [{transform_indices = @transform_0, window_bounds = array<i64: 8, 32>}, {pipeline_mode = #tpu.pipeline_mode<synchronous>, transform_indices = @transform_1, window_bounds = array<i64: 1, 32>}, {pipeline_mode = #tpu.pipeline_mode<synchronous>, transform_indices = @transform_2, window_bounds = array<i64: 1, 32>}, {pipeline_mode = #tpu.pipeline_mode<synchronous>, transform_indices = @transform_3, window_bounds = array<i64: 32, 96>}, {transform_indices = @transform_4, window_bounds = array<i64: 8, 32>}, {transform_indices = @transform_5, window_bounds = array<i64: 8, 32>}, {transform_indices = @transform_6, window_bounds = array<i64: 8, 32>}]} {
    %c0 = arith.constant 0 : index
    %c0_0 = arith.constant 0 : index
    %0 = vector.load %arg1[%c0, %c0_0] : memref<8x32xf32, #tpu.memory_space<vmem>>, vector<8x32xf32>
    %cst = arith.constant dense<0.000000e+00> : vector<8xf32>
    %1 = vector.multi_reduction <add>, %0, %cst [1] : vector<8x32xf32> to vector<8xf32>
    %2 = vector.shape_cast %1 : vector<8xf32> to vector<8x1xf32>
    %cst_1 = arith.constant 3.200000e+01 : f32
    %3 = vector.broadcast %cst_1 : f32 to vector<8x1xf32>
    %4 = arith.divf %2, %3 : vector<8x1xf32>
    %5 = vector.broadcast %4 : vector<8x1xf32> to vector<8x32xf32>
    %6 = arith.subf %0, %5 : vector<8x32xf32>
    %7 = arith.mulf %6, %6 : vector<8x32xf32>
    %cst_2 = arith.constant dense<0.000000e+00> : vector<8xf32>
    %8 = vector.multi_reduction <add>, %7, %cst_2 [1] : vector<8x32xf32> to vector<8xf32>
    %9 = vector.shape_cast %8 : vector<8xf32> to vector<8x1xf32>
    %cst_3 = arith.constant 3.200000e+01 : f32
    %10 = vector.broadcast %cst_3 : f32 to vector<8x1xf32>
    %11 = arith.divf %9, %10 : vector<8x1xf32>
    %12 = vector.broadcast %4 : vector<8x1xf32> to vector<8x32xf32>
    %13 = arith.subf %0, %12 : vector<8x32xf32>
    %cst_4 = arith.constant 9.99999974E-6 : f32
    %14 = vector.broadcast %cst_4 : f32 to vector<8x1xf32>
    %15 = arith.addf %11, %14 : vector<8x1xf32>
    %16 = math.rsqrt %15 : vector<8x1xf32>
    %17 = vector.broadcast %16 : vector<8x1xf32> to vector<8x32xf32>
    %18 = arith.mulf %13, %17 : vector<8x32xf32>
    %c0_5 = arith.constant 0 : index
    %c0_6 = arith.constant 0 : index
    %19 = vector.load %arg2[%c0_5, %c0_6] : memref<1x32xf32, #tpu.memory_space<vmem>>, vector<1x32xf32>
    %20 = vector.broadcast %19 : vector<1x32xf32> to vector<8x32xf32>
    %21 = arith.mulf %18, %20 : vector<8x32xf32>
    %c0_7 = arith.constant 0 : index
    %c0_8 = arith.constant 0 : index
    %22 = vector.load %arg3[%c0_7, %c0_8] : memref<1x32xf32, #tpu.memory_space<vmem>>, vector<1x32xf32>
    %23 = vector.broadcast %22 : vector<1x32xf32> to vector<8x32xf32>
    %24 = arith.addf %21, %23 : vector<8x32xf32>
    %25 = arith.truncf %24 : vector<8x32xf32> to vector<8x32xbf16>
    %c0_9 = arith.constant 0 : index
    %c0_10 = arith.constant 0 : index
    %26 = vector.load %arg4[%c0_9, %c0_10] : memref<32x96xbf16, #tpu.memory_space<vmem>>, vector<32x96xbf16>
    %cst_11 = arith.constant dense<0.000000e+00> : vector<8x96xf32>
    %27 = tpu.matmul %25, %26, %cst_11 {dimension_numbers = #tpu.dot_dimension_numbers<[1], [0], [0], [1], [0, 0, 1, 1], [], []>} : vector<8x32xbf16>, vector<32x96xbf16>, vector<8x96xf32> -> vector<8x96xf32>
    %28 = vector.extract_strided_slice %27 {offsets = [0, 0], sizes = [8, 32], strides = [1, 1]} : vector<8x96xf32> to vector<8x32xf32>
    %29 = arith.truncf %28 : vector<8x32xf32> to vector<8x32xbf16>
    %c0_12 = arith.constant 0 : index
    %c0_13 = arith.constant 0 : index
    %30 = vector.load %arg5[%c0_12, %c0_13] : memref<8x32xbf16, #tpu.memory_space<vmem>>, vector<8x32xbf16>
    tpu.vector_store %arg5[%c0_12, %c0_13], %29 {strides = array<i32>} : memref<8x32xbf16, #tpu.memory_space<vmem>>, vector<8x32xbf16>,
    %31 = vector.extract_strided_slice %27 {offsets = [0, 32], sizes = [8, 32], strides = [1, 1]} : vector<8x96xf32> to vector<8x32xf32>
    %32 = arith.truncf %31 : vector<8x32xf32> to vector<8x32xbf16>
    %c0_14 = arith.constant 0 : index
    %c0_15 = arith.constant 0 : index
    %33 = vector.load %arg6[%c0_14, %c0_15] : memref<8x32xbf16, #tpu.memory_space<vmem>>, vector<8x32xbf16>
    tpu.vector_store %arg6[%c0_14, %c0_15], %32 {strides = array<i32>} : memref<8x32xbf16, #tpu.memory_space<vmem>>, vector<8x32xbf16>,
    %34 = vector.extract_strided_slice %27 {offsets = [0, 64], sizes = [8, 32], strides = [1, 1]} : vector<8x96xf32> to vector<8x32xf32>
    %35 = arith.truncf %34 : vector<8x32xf32> to vector<8x32xbf16>
    %c0_16 = arith.constant 0 : index
    %c0_17 = arith.constant 0 : index
    %36 = vector.load %arg7[%c0_16, %c0_17] : memref<8x32xbf16, #tpu.memory_space<vmem>>, vector<8x32xbf16>
    tpu.vector_store %arg7[%c0_16, %c0_17], %35 {strides = array<i32>} : memref<8x32xbf16, #tpu.memory_space<vmem>>, vector<8x32xbf16>,
    return
  }
  func.func @transform_0(%arg0: i32) -> (i32, i32) {
    %c0_i32 = arith.constant 0 : i32
    %c0_i32_0 = arith.constant 0 : i32
    return %arg0, %c0_i32 : i32, i32
  }
  func.func @transform_1(%arg0: i32) -> (i32, i32) {
    %c0_i32 = arith.constant 0 : i32
    %c0_i32_0 = arith.constant 0 : i32
    %c0_i32_1 = arith.constant 0 : i32
    return %c0_i32, %c0_i32_0 : i32, i32
  }
  func.func @transform_2(%arg0: i32) -> (i32, i32) {
    %c0_i32 = arith.constant 0 : i32
    %c0_i32_0 = arith.constant 0 : i32
    %c0_i32_1 = arith.constant 0 : i32
    return %c0_i32, %c0_i32_0 : i32, i32
  }
  func.func @transform_3(%arg0: i32) -> (i32, i32) {
    %c0_i32 = arith.constant 0 : i32
    %c0_i32_0 = arith.constant 0 : i32
    %c0_i32_1 = arith.constant 0 : i32
    return %c0_i32, %c0_i32_0 : i32, i32
  }
  func.func @transform_4(%arg0: i32) -> (i32, i32) {
    %c0_i32 = arith.constant 0 : i32
    %c0_i32_0 = arith.constant 0 : i32
    return %arg0, %c0_i32 : i32, i32
  }
  func.func @transform_5(%arg0: i32) -> (i32, i32) {
    %c0_i32 = arith.constant 0 : i32
    %c0_i32_0 = arith.constant 0 : i32
    return %arg0, %c0_i32 : i32, i32
  }
  func.func @transform_6(%arg0: i32) -> (i32, i32) {
    %c0_i32 = arith.constant 0 : i32
    %c0_i32_0 = arith.constant 0 : i32
    return %arg0, %c0_i32 : i32, i32
  }
}

</mosaic_0001>

<llo_original>
// kernel: tpu_custom_call.1
$region0: #{tpu_custom_call.1}
  #allocation0 [shape = 'u32[]', space=smem, size = 0x4, offset = 0x4, fixed_abs, tag = 'smem constant byte address 0x4 - core index']
  #allocation1 [shape = 'u32[144,128]{1,0:T(1,128)}', space=vmem, size = 0x12000, scoped, tag = 'internal scratch']
  %s0 = inlined_call_operand.hbm [shape: f32[16,32], index: 0, kind: input, shape index: {}]
  %s1 = inlined_call_operand.vmem [shape: f32[1,32], index: 1, kind: input, shape index: {}]
  %s2 = inlined_call_operand.vmem [shape: f32[1,32], index: 2, kind: input, shape index: {}]
  %s3 = inlined_call_operand.hbm [shape: bf16[32,96], index: 3, kind: input, shape index: {}]
  %s4 = inlined_call_operand.hbm [shape: bf16[16,32], index: 4, kind: output, shape index: {0}]
  %s5 = inlined_call_operand.hbm [shape: bf16[16,32], index: 5, kind: output, shape index: {1}]
  %s6 = inlined_call_operand.hbm [shape: bf16[16,32], index: 6, kind: output, shape index: {2}]
  %7 = xla_tuple %s4, %s5, %s6
  %s8 = sld [smem:[#allocation0]]
  $region73: #{tpu_custom_call.1} parent=0
    _
  %s10 = ssub.s32 1, %s8
  %s11 = scalar_select 0, %s10, %s8
  $region1: #{tpu_custom_call.1} parent=0
    #allocation2 [shape = 'u8[8192]{0}', space=vmem, size = 0x2000, scoped, tag = 'input window, operand 0']
    #allocation3 [shape = 's32[2]{0}', space=sflag, size = 0x8, scoped, tag = 'scoped memory for tpu_custom_call.1']
    #allocation4 [shape = 's32[2]{0}', space=sflag, size = 0x8, scoped, tag = 'scoped memory for tpu_custom_call.1']
    #allocation5 [shape = 'u8[8192]{0}', space=vmem, size = 0x2000, scoped, tag = 'input window, operand 3, single buffered']
    #allocation6 [shape = 's32[1]{0}', space=sflag, size = 0x4, scoped, tag = 'scoped memory for tpu_custom_call.1']
    #allocation7 [shape = 'u8[4096]{0}', space=vmem, size = 0x1000, scoped, tag = 'output window, operand 0']
    #allocation8 [shape = 'u8[4096]{0}', space=vmem, size = 0x1000, scoped, tag = 'output window, operand 1']
    #allocation9 [shape = 's32[2]{0}', space=sflag, size = 0x8, scoped, tag = 'scoped memory for tpu_custom_call.1']
    #allocation10 [shape = 'u8[4096]{0}', space=vmem, size = 0x1000, scoped, tag = 'output window, operand 2']
    %12 = vsyncpa [#allocation3], 0
    %s13 = scalar_lea.sflag [#allocation3], 1
    %14 = vsyncpa %s13, 0
    %15 = vsyncpa [#allocation6], 0
    %16 = vsyncpa [#allocation4], 0
    %s17 = scalar_lea.sflag [#allocation4], 1
    %18 = vsyncpa %s17, 0
    %19 = vsyncpa [#allocation9], 0
    %s20 = scalar_lea.sflag [#allocation9], 1
    %21 = vsyncpa %s20, 0
    loop: start=0, step=1, limit=4
    $region2: #{tpu_custom_call.1} parent=1 // loop_pre_header
      _
    $region3: #{tpu_custom_call.1} parent=1 // loop_header
      %s23 = sphi 0, %s27
      %p24 = scmp.ge.s32.totalorder %s23, 4
      %s33 = sphi 0, %s35
      %s36 = sphi 0, %s33
      %s37 = sphi 0, %s36
      %s53 = sphi 0, %s37
      %s57 = sphi 0, %s57
      %s59 = sphi 0, %s57
      %s60 = sphi 0, %s59
      %s74 = sphi 0, %s60
      %s78 = sphi 0, %s78
      %s80 = sphi 0, %s78
      %s81 = sphi 0, %s80
      %s95 = sphi 0, %s81
      %s99 = sphi 0, %s99
      %s101 = sphi 0, %s99
      %s102 = sphi 0, %s101
      %s116 = sphi 0, %s102
      %s122 = sphi 0, %s124
      %s125 = sphi 0, %s122
      %s126 = sphi 0, %s125
      %s142 = sphi 0, %s126
      %s148 = sphi 0, %s150
      %s151 = sphi 0, %s148
      %s152 = sphi 0, %s151
      %s168 = sphi 0, %s152
      %s174 = sphi 0, %s176
      %s177 = sphi 0, %s174
      %s178 = sphi 0, %s177
      %s194 = sphi 0, %s178
    $region4: #{tpu_custom_call.1} parent=1 // loop_header_branch
      %26 = sbr.rel (%p24) target = $region8
    $region5: #{tpu_custom_call.1} parent=1 // loop_body
      %s28 = ssub.s32 %s23, 1
      %s29 = ssub.s32 %s23, 2
      %s30 = sadd.s32 %s23, 1
      %s31 = ssub.s32 %s23, %s30
      %p32 = scmp.eq.s32.totalorder %s31, 0
      %s34 = sadd.s32 %s33, 1
      %s35 = scalar_select %p32, %s33, %s34
      %p38 = pneg %p32
      %p39 = scmp.eq.s32.totalorder %s23, 1
      %p40 = por %p38, %p39
      %p41 = scmp.ne.s32.totalorder %s33, %s36
      %p42 = scmp.eq.s32.totalorder %s23, 0
      %p43 = por %p41, %p42
      %p44 = scmp.ne.s32.totalorder %s33, %s36
      %p45 = scmp.eq.s32.totalorder %s28, 1
      %p46 = por %p44, %p45
      %p47 = scmp.ne.s32.totalorder %s36, %s37
      %p48 = scmp.eq.s32.totalorder %s28, 0
      %p49 = por %p47, %p48
      %p50 = scmp.ne.s32.totalorder %s36, %s37
      %p51 = scmp.eq.s32.totalorder %s29, 1
      %p52 = por %p50, %p51
      %p54 = scmp.ne.s32.totalorder %s37, %s53
      %p55 = scmp.eq.s32.totalorder %s29, 0
      %p56 = por %p54, %p55
      %s58 = sadd.s32 %s57, 1
      %p61 = scmp.eq.s32.totalorder %s23, 1
      %p62 = scmp.ne.s32.totalorder %s57, %s59
      %p63 = scmp.eq.s32.totalorder %s23, 0
      %p64 = por %p62, %p63
      %p65 = scmp.ne.s32.totalorder %s57, %s59
      %p66 = scmp.eq.s32.totalorder %s28, 1
      %p67 = por %p65, %p66
      %p68 = scmp.ne.s32.totalorder %s59, %s60
      %p69 = scmp.eq.s32.totalorder %s28, 0
      %p70 = por %p68, %p69
      %p71 = scmp.ne.s32.totalorder %s59, %s60
      %p72 = scmp.eq.s32.totalorder %s29, 1
      %p73 = por %p71, %p72
      %p75 = scmp.ne.s32.totalorder %s60, %s74
      %p76 = scmp.eq.s32.totalorder %s29, 0
      %p77 = por %p75, %p76
      %s79 = sadd.s32 %s78, 1
      %p82 = scmp.eq.s32.totalorder %s23, 1
      %p83 = scmp.ne.s32.totalorder %s78, %s80
      %p84 = scmp.eq.s32.totalorder %s23, 0
      %p85 = por %p83, %p84
      %p86 = scmp.ne.s32.totalorder %s78, %s80
      %p87 = scmp.eq.s32.totalorder %s28, 1
      %p88 = por %p86, %p87
      %p89 = scmp.ne.s32.totalorder %s80, %s81
      %p90 = scmp.eq.s32.totalorder %s28, 0
      %p91 = por %p89, %p90
      %p92 = scmp.ne.s32.totalorder %s80, %s81
      %p93 = scmp.eq.s32.totalorder %s29, 1
      %p94 = por %p92, %p93
      %p96 = scmp.ne.s32.totalorder %s81, %s95
      %p97 = scmp.eq.s32.totalorder %s29, 0
      %p98 = por %p96, %p97
      %s100 = sadd.s32 %s99, 1
      %p103 = scmp.eq.s32.totalorder %s23, 1
      %p104 = scmp.ne.s32.totalorder %s99, %s101
      %p105 = scmp.eq.s32.totalorder %s23, 0
      %p106 = por %p104, %p105
      %p107 = scmp.ne.s32.totalorder %s99, %s101
      %p108 = scmp.eq.s32.totalorder %s28, 1
      %p109 = por %p107, %p108
      %p110 = scmp.ne.s32.totalorder %s101, %s102
      %p111 = scmp.eq.s32.totalorder %s28, 0
      %p112 = por %p110, %p111
      %p113 = scmp.ne.s32.totalorder %s101, %s102
      %p114 = scmp.eq.s32.totalorder %s29, 1
      %p115 = por %p113, %p114
      %p117 = scmp.ne.s32.totalorder %s102, %s116
      %p118 = scmp.eq.s32.totalorder %s29, 0
      %p119 = por %p117, %p118
      %s120 = ssub.s32 %s23, %s30
      %p121 = scmp.eq.s32.totalorder %s120, 0
      %s123 = sadd.s32 %s122, 1
      %s124 = scalar_select %p121, %s122, %s123
      %p127 = pneg %p121
      %p128 = scmp.eq.s32.totalorder %s23, 1
      %p129 = por %p127, %p128
      %p130 = scmp.ne.s32.totalorder %s122, %s125
      %p131 = scmp.eq.s32.totalorder %s23, 0
      %p132 = por %p130, %p131
      %p133 = scmp.ne.s32.totalorder %s122, %s125
      %p134 = scmp.eq.s32.totalorder %s28, 1
      %p135 = por %p133, %p134
      %p136 = scmp.ne.s32.totalorder %s125, %s126
      %p137 = scmp.eq.s32.totalorder %s28, 0
      %p138 = por %p136, %p137
      %p139 = scmp.ne.s32.totalorder %s125, %s126
      %p140 = scmp.eq.s32.totalorder %s29, 1
      %p141 = por %p139, %p140
      %p143 = scmp.ne.s32.totalorder %s126, %s142
      %p144 = scmp.eq.s32.totalorder %s29, 0
      %p145 = por %p143, %p144
      %s146 = ssub.s32 %s23, %s30
      %p147 = scmp.eq.s32.totalorder %s146, 0
      %s149 = sadd.s32 %s148, 1
      %s150 = scalar_select %p147, %s148, %s149
      %p153 = pneg %p147
      %p154 = scmp.eq.s32.totalorder %s23, 1
      %p155 = por %p153, %p154
      %p156 = scmp.ne.s32.totalorder %s148, %s151
      %p157 = scmp.eq.s32.totalorder %s23, 0
      %p158 = por %p156, %p157
      %p159 = scmp.ne.s32.totalorder %s148, %s151
      %p160 = scmp.eq.s32.totalorder %s28, 1
      %p161 = por %p159, %p160
      %p162 = scmp.ne.s32.totalorder %s151, %s152
      %p163 = scmp.eq.s32.totalorder %s28, 0
      %p164 = por %p162, %p163
      %p165 = scmp.ne.s32.totalorder %s151, %s152
      %p166 = scmp.eq.s32.totalorder %s29, 1
      %p167 = por %p165, %p166
      %p169 = scmp.ne.s32.totalorder %s152, %s168
      %p170 = scmp.eq.s32.totalorder %s29, 0
      %p171 = por %p169, %p170
      %s172 = ssub.s32 %s23, %s30
      %p173 = scmp.eq.s32.totalorder %s172, 0
      %s175 = sadd.s32 %s174, 1
      %s176 = scalar_select %p173, %s174, %s175
      %p179 = pneg %p173
      %p180 = scmp.eq.s32.totalorder %s23, 1
      %p181 = por %p179, %p180
      %p182 = scmp.ne.s32.totalorder %s174, %s177
      %p183 = scmp.eq.s32.totalorder %s23, 0
      %p184 = por %p182, %p183
      %p185 = scmp.ne.s32.totalorder %s174, %s177
      %p186 = scmp.eq.s32.totalorder %s28, 1
      %p187 = por %p185, %p186
      %p188 = scmp.ne.s32.totalorder %s177, %s178
      %p189 = scmp.eq.s32.totalorder %s28, 0
      %p190 = por %p188, %p189
      %p191 = scmp.ne.s32.totalorder %s177, %s178
      %p192 = scmp.eq.s32.totalorder %s29, 1
      %p193 = por %p191, %p192
      %p195 = scmp.ne.s32.totalorder %s178, %s194
      %p196 = scmp.eq.s32.totalorder %s29, 0
      %p197 = por %p195, %p196
      %p198 = scmp.le.s32.totalorder 1, %s23
      %p199 = scmp.lt.s32.totalorder %s23, 3
      %p200 = pnand %p198, %p199
      %p201 = pneg %p200
      // Predicated region
      $region9: #{tpu_custom_call.1} parent=5 // pred_check
        _
      $region10: #{tpu_custom_call.1} parent=5 // pred_check_branch
        %203 = sbr.rel (%p200) target = $region12
      $region11: #{tpu_custom_call.1} parent=5 // pred_region
        %s204 = ssub.s32 %s23, 1
        // Predicated region
        $region13: #{tpu_custom_call.1} parent=11 // pred_check
          %p205 = pneg %p70
        $region14: #{tpu_custom_call.1} parent=11 // pred_check_branch
          %207 = sbr.rel (%p205) target = $region16
        $region15: #{tpu_custom_call.1} parent=11 // pred_region
          _
        $region16: #{tpu_custom_call.1} parent=11 // pred_fallthru
          _
        // Predicated region
        $region17: #{tpu_custom_call.1} parent=11 // pred_check
          %p208 = pneg %p91
        $region18: #{tpu_custom_call.1} parent=11 // pred_check_branch
          %210 = sbr.rel (%p208) target = $region20
        $region19: #{tpu_custom_call.1} parent=11 // pred_region
          _
        $region20: #{tpu_custom_call.1} parent=11 // pred_fallthru
          _
        // Predicated region
        $region21: #{tpu_custom_call.1} parent=11 // pred_check
          %p211 = pneg %p112
        $region22: #{tpu_custom_call.1} parent=11 // pred_check_branch
          %213 = sbr.rel (%p211) target = $region24
        $region23: #{tpu_custom_call.1} parent=11 // pred_region
          %s215 = ssub.s32 256, 256
          %216 = vsyncadd [#allocation6], %s215
          %s217 = sshll.u32 [#allocation5], 4
          %s218 = int_to_ptr.vmem [resolvable:$true] %s217
          %223 = dma.hbm_to_vmem [thread:$0]  %s3, 256, %s218, [#allocation6], 64, 64, 4
        $region24: #{tpu_custom_call.1} parent=11 // pred_fallthru
          _
      $region12: #{tpu_custom_call.1} parent=5 // pred_fallthru
        _
      %p224 = scmp.lt.s32.totalorder %s23, 2
      // Predicated region
      $region25: #{tpu_custom_call.1} parent=5 // pred_check
        %p225 = pneg %p224
      $region26: #{tpu_custom_call.1} parent=5 // pred_check_branch
        %227 = sbr.rel (%p225) target = $region28
      $region27: #{tpu_custom_call.1} parent=5 // pred_region
        // Predicated region
        $region29: #{tpu_custom_call.1} parent=27 // pred_check
          %p228 = pneg %p43
        $region30: #{tpu_custom_call.1} parent=27 // pred_check_branch
          %230 = sbr.rel (%p228) target = $region32
        $region31: #{tpu_custom_call.1} parent=27 // pred_region
          %s231 = sand.u32 %s33, 1
          %s232 = scalar_lea.sflag [#allocation3], %s231
          %s233 = sand.u32 %s33, 1
          %s234 = smul.addr %s233, 8
          %s235 = scalar_lea.vmem [#allocation2], %s234
          %s237 = ssub.s32 128, 128
          %238 = vsyncadd %s232, %s237
          %s239 = smul.addr %s23, 128
          %s240 = scalar_lea.hbm %s0, %s239
          %s242 = sshll.u32 %s235, 4
          %s243 = int_to_ptr.vmem [resolvable:$true] %s242
          %245 = dma.hbm_to_vmem [thread:$0]  %s240, 128, %s243, %s232
        $region32: #{tpu_custom_call.1} parent=27 // pred_fallthru
          _
      $region28: #{tpu_custom_call.1} parent=5 // pred_fallthru
        _
      %p246 = scmp.le.s32.totalorder 1, %s23
      %p247 = scmp.lt.s32.totalorder %s23, 3
      %p248 = pnand %p246, %p247
      %p249 = pneg %p248
      // Predicated region
      $region33: #{tpu_custom_call.1} parent=5 // pred_check
        _
      $region34: #{tpu_custom_call.1} parent=5 // pred_check_branch
        %251 = sbr.rel (%p248) target = $region36
      $region35: #{tpu_custom_call.1} parent=5 // pred_region
        %s252 = ssub.s32 %s23, 1
        %s253 = sand.u32 %s36, 1
        %s254 = scalar_lea.sflag [#allocation3], %s253
        %s255 = sand.u32 %s36, 1
        %s256 = smul.addr %s255, 8
        %s257 = scalar_lea.vmem [#allocation2], %s256
        // Predicated region
        $region37: #{tpu_custom_call.1} parent=35 // pred_check
          %p258 = pneg %p49
        $region38: #{tpu_custom_call.1} parent=35 // pred_check_branch
          %260 = sbr.rel (%p258) target = $region40
        $region39: #{tpu_custom_call.1} parent=35 // pred_region
          %261 = dma.done %s254, 128
        $region40: #{tpu_custom_call.1} parent=35 // pred_fallthru
          _
        // Predicated region
        $region41: #{tpu_custom_call.1} parent=35 // pred_check
          %p262 = pneg %p112
        $region42: #{tpu_custom_call.1} parent=35 // pred_check_branch
          %264 = sbr.rel (%p262) target = $region44
        $region43: #{tpu_custom_call.1} parent=35 // pred_region
          %265 = dma.done [#allocation6], 256
        $region44: #{tpu_custom_call.1} parent=35 // pred_fallthru
          _
        %s266 = sand.u32 %s36, 1
        %s267 = scalar_lea.sflag [#allocation3], %s266
        %s268 = sand.u32 %s36, 1
        %s269 = smul.addr %s268, 8
        %s270 = scalar_lea.vmem [#allocation2], %s269
        %p271 = pneg %p49
        %p272 = pneg %p46
        %p273 = pneg %p70
        %p274 = pneg %p67
        %p275 = pneg %p91
        %p276 = pneg %p88
        %p277 = pneg %p112
        %p278 = pneg %p109
        %p279 = pneg %p138
        %p280 = pneg %p135
        %s281 = sand.u32 %s125, 1
        %s282 = scalar_lea.sflag [#allocation4], %s281
        %s283 = sand.u32 %s125, 1
        %s284 = smul.addr %s283, 4
        %s285 = scalar_lea.vmem [#allocation7], %s284
        %p286 = pneg %p164
        %p287 = pneg %p161
        %s288 = sand.u32 %s28, 1
        %s289 = scalar_lea.sflag [#allocation9], %s288
        %s290 = sand.u32 %s151, 1
        %s291 = smul.addr %s290, 4
        %s292 = scalar_lea.vmem [#allocation8], %s291
        %p293 = pneg %p190
        %p294 = pneg %p187
        %s295 = sand.u32 %s28, 1
        %s296 = scalar_lea.sflag [#allocation9], %s295
        %s297 = sand.u32 %s177, 1
        %s298 = smul.addr %s297, 4
        %s299 = scalar_lea.vmem [#allocation10], %s298
        %v301 = vld [vmem:[%s257] sm:$0xff]
        %vm302 = vcmask 261120
        %v303 = vsel %vm302, %v301, 0.0
        %304 = vadd.xlane.f32.xlu0 %v303
        %v305 = vpop.xlane.xlu0 %304
        %v306 = vrcp.pop 32.0
        %v307 = vmul.f32 %v305, %v306
        %v308 = vsub.f32 %v301, %v307
        %v309 = vmul.f32 %v308, %v308
        %v310 = vsel %vm302, %v309, 0.0
        %311 = vadd.xlane.f32.xlu0 %v310
        %v312 = vpop.xlane.xlu0 %311
        %v313 = vmul.f32 %v312, %v306
        %v314 = vadd.f32 %v313, 1e-05
        %v315 = vrsqrt.pop %v314
        %v316 = vmul.f32 %v308, %v315
        %v317 = vld [vmem:[%s1] sm:$0x1]
        %v319 = vlaneseq
        %v320 = vshrl.u32 %v319, 7
        %v321 = vsub.s32 0, %v320
        %v322 = vrot.slane %v317, %v321
        %v324 = vmul.f32 %v316, %v322
        %v325 = vld [vmem:[%s2] sm:$0x1]
        %v327 = vlaneseq
        %v328 = vshrl.u32 %v327, 7
        %v329 = vsub.s32 0, %v328
        %v330 = vrot.slane %v325, %v329
        %v332 = vadd.f32 %v324, %v330
        %v333 = vpack.c.bf16 %v332, %v332
        %v334 = vld [vmem:[#allocation5] sm:$0xf]
        %v335 = vld [vmem:[#allocation5 + $0x4] sm:$0xf]
        %v336 = vld [vmem:[#allocation5 + $0x8] sm:$0xf]
        %v337 = vld [vmem:[#allocation5 + $0xc] sm:$0xf]
        %v342 = vunpack.c.l.b16 %v334
        %v343 = vunpack.c.l.b16 %v335
        %v344 = vunpack.c.l.b16 %v336
        %v345 = vunpack.c.l.b16 %v337
        %v346 = vpack.c.b16 %v343, %v342
        %v347 = vpack.c.b16 %v345, %v344
        %v351 = vsel %vm302, %v333, 0
        %353 = vmatprep.subr.bf16.mxu0 0
        %354 = vmatpush1.bf16.msra.mxu0 0
        %355 = vmatprep.subr.bf16.mxu0 0
        %356 = vmatpush1.bf16.msra.mxu0 0
        %357 = vmatprep.subr.bf16.mxu0 0
        %358 = vmatpush1.bf16.msra.mxu0 0
        %359 = vmatprep.subr.bf16.mxu0 0
        %360 = vmatpush1.bf16.msra.mxu0 0
        %361 = vmatprep.subr.bf16.mxu0 0
        %362 = vmatpush1.bf16.msra.mxu0 0
        %363 = vmatprep.subr.bf16.mxu0 0
        %364 = vmatpush1.bf16.msra.mxu0 0
        %365 = vmatprep.subr.bf16.mxu0 0
        %366 = vmatpush1.bf16.msra.mxu0 %v347
        %367 = vmatprep.subr.bf16.mxu0 0
        %368 = vmatpush1.bf16.msra.mxu0 %v346
        %369 = vmatprep.subr.bf16.mxu0 0
        %370 = vmatpush2.bf16.msra.mxu0 0
        %371 = vmatprep.subr.bf16.mxu0 0
        %372 = vmatpush2.bf16.msra.mxu0 0
        %373 = vmatprep.subr.bf16.mxu0 0
        %374 = vmatpush2.bf16.msra.mxu0 0
        %375 = vmatprep.subr.bf16.mxu0 0
        %376 = vmatpush2.bf16.msra.mxu0 0
        %377 = vmatprep.subr.bf16.mxu0 0
        %378 = vmatpush2.bf16.msra.mxu0 0
        %379 = vmatprep.subr.bf16.mxu0 0
        %380 = vmatpush2.bf16.msra.mxu0 0
        %381 = vmatprep.subr.bf16.mxu0 0
        %382 = vmatpush2.bf16.msra.mxu0 0
        %383 = vmatprep.subr.bf16.mxu0 0
        %384 = vmatpush2.bf16.msra.mxu0 0
        %385 = vmatprep.mubr.bf16.mxu0 0
        %386 = vmatmul.mubr.bf16.gmra.mxu0 %v351
        %v387 = vpop.f32.mrf.mxu0
        %v388 = vadd.f32 0.0, %v387
        %v389 = vpop.f32.mrf.mxu0
        %v390 = vpop.f32.mrf.mxu0
        %v391 = vpop.f32.mrf.mxu0
        %392 = vdwg.mxu0
        %v393 = vpack.c.bf16 %v388, %v388
        %vm394 = vcmask 257024
        %395 = vst.msk [vmem:[%s285] sm:$0xf] %vm394, %v393
        %v397 = vunpack.c.l.b16 %v393
        %v398 = vpack.c.b16 %v397, %v397
        %399 = vrot.lane.b32.xlu0 %v398, 96
        %v400 = vpop.permute.xlu0 %399
        %402 = vst.msk [vmem:[%s292] sm:$0xf] %vm394, %v400
        %403 = vrot.lane.b32.xlu0 %v398, 64
        %v404 = vpop.permute.xlu0 %403
        %406 = vst.msk [vmem:[%s299] sm:$0xf] %vm394, %v404
        %s407 = sand.u32 %s125, 1
        %s408 = scalar_lea.sflag [#allocation4], %s407
        %s409 = sand.u32 %s125, 1
        %s410 = smul.addr %s409, 4
        %s411 = scalar_lea.vmem [#allocation7], %s410
        %s412 = sand.u32 %s28, 1
        %s413 = scalar_lea.sflag [#allocation9], %s412
        %s414 = sand.u32 %s151, 1
        %s415 = smul.addr %s414, 4
        %s416 = scalar_lea.vmem [#allocation8], %s415
        %s417 = sand.u32 %s28, 1
        %s418 = scalar_lea.sflag [#allocation9], %s417
        %s419 = sand.u32 %s177, 1
        %s420 = smul.addr %s419, 4
        %s421 = scalar_lea.vmem [#allocation10], %s420
        // Predicated region
        $region45: #{tpu_custom_call.1} parent=35 // pred_check
          %p422 = pneg %p135
        $region46: #{tpu_custom_call.1} parent=35 // pred_check_branch
          %424 = sbr.rel (%p422) target = $region48
        $region47: #{tpu_custom_call.1} parent=35 // pred_region
          %s426 = ssub.s32 64, 64
          %427 = vsyncadd %s408, %s426
          %s428 = smul.addr %s28, 64
          %s429 = scalar_lea.hbm %s4, %s428
          %s431 = sshll.u32 %s411, 4
          %s432 = int_to_ptr.vmem [resolvable:$true] %s431
          %434 = dma.vmem_to_hbm [thread:$0]  %s432, 64, %s429, %s408
        $region48: #{tpu_custom_call.1} parent=35 // pred_fallthru
          _
        // Predicated region
        $region49: #{tpu_custom_call.1} parent=35 // pred_check
          %p435 = pneg %p161
        $region50: #{tpu_custom_call.1} parent=35 // pred_check_branch
          %437 = sbr.rel (%p435) target = $region52
        $region51: #{tpu_custom_call.1} parent=35 // pred_region
          %s439 = ssub.s32 64, 64
          %440 = vsyncadd %s413, %s439
          %s441 = smul.addr %s28, 64
          %s442 = scalar_lea.hbm %s5, %s441
          %s444 = sshll.u32 %s416, 4
          %s445 = int_to_ptr.vmem [resolvable:$true] %s444
          %447 = dma.vmem_to_hbm [thread:$0]  %s445, 64, %s442, %s413
        $region52: #{tpu_custom_call.1} parent=35 // pred_fallthru
          _
        // Predicated region
        $region53: #{tpu_custom_call.1} parent=35 // pred_check
          %p448 = pneg %p187
        $region54: #{tpu_custom_call.1} parent=35 // pred_check_branch
          %450 = sbr.rel (%p448) target = $region56
        $region55: #{tpu_custom_call.1} parent=35 // pred_region
          %s452 = ssub.s32 64, 64
          %453 = vsyncadd %s418, %s452
          %s454 = smul.addr %s28, 64
          %s455 = scalar_lea.hbm %s6, %s454
          %s457 = sshll.u32 %s421, 4
          %s458 = int_to_ptr.vmem [resolvable:$true] %s457
          %460 = dma.vmem_to_hbm [thread:$0]  %s458, 64, %s455, %s418
        $region56: #{tpu_custom_call.1} parent=35 // pred_fallthru
          _
      $region36: #{tpu_custom_call.1} parent=5 // pred_fallthru
        _
      %p461 = scmp.le.s32.totalorder 2, %s23
      // Predicated region
      $region57: #{tpu_custom_call.1} parent=5 // pred_check
        %p462 = pneg %p461
      $region58: #{tpu_custom_call.1} parent=5 // pred_check_branch
        %464 = sbr.rel (%p462) target = $region60
      $region59: #{tpu_custom_call.1} parent=5 // pred_region
        %s465 = ssub.s32 %s23, 2
        // Predicated region
        $region61: #{tpu_custom_call.1} parent=59 // pred_check
          %p466 = pneg %p141
        $region62: #{tpu_custom_call.1} parent=59 // pred_check_branch
          %468 = sbr.rel (%p466) target = $region64
        $region63: #{tpu_custom_call.1} parent=59 // pred_region
          %s469 = sand.u32 %s126, 1
          %s470 = scalar_lea.sflag [#allocation4], %s469
          %s471 = sand.u32 %s126, 1
          %s472 = smul.addr %s471, 4
          %s473 = scalar_lea.vmem [#allocation7], %s472
          %474 = dma.done %s470, 64
        $region64: #{tpu_custom_call.1} parent=59 // pred_fallthru
          _
        // Predicated region
        $region65: #{tpu_custom_call.1} parent=59 // pred_check
          %p475 = pneg %p167
        $region66: #{tpu_custom_call.1} parent=59 // pred_check_branch
          %477 = sbr.rel (%p475) target = $region68
        $region67: #{tpu_custom_call.1} parent=59 // pred_region
          %s478 = sand.u32 %s29, 1
          %s479 = scalar_lea.sflag [#allocation9], %s478
          %s480 = sand.u32 %s152, 1
          %s481 = smul.addr %s480, 4
          %s482 = scalar_lea.vmem [#allocation8], %s481
          %483 = dma.done %s479, 64
        $region68: #{tpu_custom_call.1} parent=59 // pred_fallthru
          _
        // Predicated region
        $region69: #{tpu_custom_call.1} parent=59 // pred_check
          %p484 = pneg %p193
        $region70: #{tpu_custom_call.1} parent=59 // pred_check_branch
          %486 = sbr.rel (%p484) target = $region72
        $region71: #{tpu_custom_call.1} parent=59 // pred_region
          %s487 = sand.u32 %s29, 1
          %s488 = scalar_lea.sflag [#allocation9], %s487
          %s489 = sand.u32 %s178, 1
          %s490 = smul.addr %s489, 4
          %s491 = scalar_lea.vmem [#allocation10], %s490
          %492 = dma.done %s488, 64
        $region72: #{tpu_custom_call.1} parent=59 // pred_fallthru
          _
      $region60: #{tpu_custom_call.1} parent=5 // pred_fallthru
        _
    $region6: #{tpu_custom_call.1} parent=1 // loop_footer
      %s27 = sadd.s32 1, %s23
    $region7: #{tpu_custom_call.1} parent=1 // loop_footer_branch
      %22 = sbr.rel target = $region3
    $region8: #{tpu_custom_call.1} parent=1 // loop_exit
      _
    %493 = vsyncpa [#allocation3], 1
    %s494 = scalar_lea.sflag [#allocation3], 1
    %495 = vsyncpa %s494, 1
    %496 = vsyncpa [#allocation6], 1
    %497 = vsyncpa [#allocation4], 1
    %s498 = scalar_lea.sflag [#allocation4], 1
    %499 = vsyncpa %s498, 1
    %500 = vsyncpa [#allocation9], 1
    %s501 = scalar_lea.sflag [#allocation9], 1
    %502 = vsyncpa %s501, 1

</llo_original>
